<compile_context>
chip_gen: v5e
topology: v5e:2x2
jax: 0.10.0
libtpu: 0.0.40
codegen_flags: <defaults>
</compile_context>

<pallas_src>
import functools
import math

import jax
import jax.numpy as jnp
from jax.experimental import pallas as pl
from jax.experimental.pallas import tpu as pltpu

ALPHA = 0.1
BETA = 1.0
_NEG_LOG_LABEL_EPS = -math.log(1e-4)  # = -log(clip floor of the one-hot labels)
_LANE = 128
_SUBLANE = 8


def _sce_kernel(x_ref, y_ref, out_ref, acc_ref, *, n_total, alpha, beta, batch_axis):
    # batch_axis == 0: x (TILE_N, C), y (TILE_N, 1)   -- classes along lanes
    # batch_axis == 1: x (C, TILE_N), y (1, TILE_N)   -- batch along lanes
    # out_ref: (1, 1) float32 scalar loss in SMEM
    # acc_ref: (1,)   float32 accumulator in SMEM (persists across grid steps)
    i = pl.program_id(0)
    n_tiles = pl.num_programs(0)
    class_axis = 1 - batch_axis

    @pl.when(i == 0)
    def _():
        acc_ref[0] = jnp.float32(0.0)

    x = x_ref[...].astype(jnp.float32)
    y = y_ref[...]                                  # int32, size-1 class axis
    tile_n = x.shape[batch_axis]

    # Row-validity mask for the (possibly partial) last tile. Zeroing invalid
    # rows before exp keeps everything finite regardless of padded garbage.
    row_ids = i * tile_n + jax.lax.broadcasted_iota(jnp.int32, y.shape, batch_axis)
    valid = row_ids < n_total                       # same shape as y
    vmask = valid.astype(jnp.float32)
    x = jnp.where(valid, x, 0.0)

    # target selector via broadcasted iota compare (no one-hot float array kept)
    class_ids = jax.lax.broadcasted_iota(jnp.int32, x.shape, class_axis)
    is_target = class_ids == y                      # (tile) bool

    # --- softmax pieces (single N*C transcendental: the exp) ---
    m = jnp.max(x, axis=class_axis, keepdims=True)
    ex = jnp.exp(x - m)
    denom = jnp.sum(ex, axis=class_axis, keepdims=True)
    inv = pl.reciprocal(denom, approx=False)        # per-row, EUP

    # --- cross entropy (no (N,C) log_probs materialized) ---
    x_t = jnp.sum(jnp.where(is_target, x, 0.0), axis=class_axis, keepdims=True)
    ce_per = (m + jnp.log(denom)) - x_t

    # --- reverse cross entropy, log- and division-free over C ---
    # sum_c clip(p,1e-7,1) = inv * sum_c max(ex, 1e-7*denom); upper clip is a no-op.
    sum_p = inv * jnp.sum(jnp.maximum(ex, jnp.float32(1e-7) * denom),
                          axis=class_axis, keepdims=True)
    p_t = jnp.clip(jnp.exp(x_t - m) * inv, 1e-7, 1.0)
    rce_per = _NEG_LOG_LABEL_EPS * (sum_p - p_t)

    tile_sum = jnp.sum(vmask * (alpha * ce_per + beta * rce_per))
    acc_ref[0] += tile_sum

    @pl.when(i == n_tiles - 1)
    def _():
        out_ref[0, 0] = acc_ref[0] * jnp.float32(1.0 / n_total)


def symmetric_cross_entropy(
    logits: jax.Array,
    targets: jax.Array,
    *,
    alpha: float = ALPHA,
    beta: float = BETA,
    tile_n: int | None = None,
) -> jax.Array:
    """logits: [N, C] float (f32 or bf16), targets: [N] int class ids -> scalar f32."""
    n, c = logits.shape
    itemsize = jnp.dtype(logits.dtype).itemsize
    batch_along_lanes = c < _LANE          # small class count: batch fills the lane axis
    align = _LANE if batch_along_lanes else _SUBLANE

    if tile_n is None:
        budget = 8 * 1024 * 1024           # per pipelined logits buffer (double-buffered)
        rows = budget // max(1, c * itemsize)
        cap = 32768 if batch_along_lanes else 1024
        rows = max(align, min(cap, (rows // align) * align))
        tile_n = n if n <= rows else rows
    else:
        # keep user tile but honor the (8,128) block-shape constraint
        tile_n = min(n, max(align, -(-int(tile_n) // align) * align))
    grid = (pl.cdiv(n, tile_n),)

    batch_axis = 1 if batch_along_lanes else 0
    kernel = functools.partial(_sce_kernel, n_total=n, alpha=float(alpha),
                               beta=float(beta), batch_axis=batch_axis)

    targets_i32 = targets.astype(jnp.int32)
    if batch_along_lanes:
        x_in = logits.T                          # (C, N)
        y_in = targets_i32.reshape(1, n)         # (1, N)
        in_specs = [pl.BlockSpec((c, tile_n), lambda i: (0, i)),
                    pl.BlockSpec((1, tile_n), lambda i: (0, i))]
    else:
        x_in = logits                            # (N, C)
        y_in = targets_i32.reshape(n, 1)         # (N, 1)
        in_specs = [pl.BlockSpec((tile_n, c), lambda i: (i, 0)),
                    pl.BlockSpec((tile_n, 1), lambda i: (i, 0))]

    cost = pl.CostEstimate(
        flops=int(10 * n * c),
        transcendentals=int(n * c + 3 * n),      # exp over N*C; log/exp/recip over N
        bytes_accessed=int(n * c * itemsize + n * 4 + 4),
    )

    out = pl.pallas_call(
        kernel,
        out_shape=jax.ShapeDtypeStruct((1, 1), jnp.float32),
        grid_spec=pltpu.PrefetchScalarGridSpec(
            num_scalar_prefetch=0,
            grid=grid,
            in_specs=in_specs,
            out_specs=pl.BlockSpec(memory_space=pltpu.MemorySpace.SMEM),
            scratch_shapes=[pltpu.SMEM((1,), jnp.float32)],
        ),
        compiler_params=pltpu.CompilerParams(
            dimension_semantics=("arbitrary",),   # batch axis carries the accumulator
            vmem_limit_bytes=32 * 1024 * 1024,
        ),
        cost_estimate=cost,
    )(x_in, y_in)
    return out[0, 0]
    # TODO(synk): optional v7x 2-TensorCore split (leading "parallel" axis with
    # per-core partial sums) left out to keep a single portable reduction path.


def _reference(logits, targets, alpha=ALPHA, beta=BETA):
    # Pure-JAX reference mirroring the PyTorch forward exactly.
    x = logits.astype(jnp.float32)
    n, c = x.shape
    logp = jax.nn.log_softmax(x, axis=1)
    ce = -jnp.mean(jnp.take_along_axis(logp, targets.reshape(n, 1), axis=1))
    p = jnp.clip(jax.nn.softmax(x, axis=1), 1e-7, 1.0)
    oh = jnp.clip(jax.nn.one_hot(targets, c, dtype=jnp.float32), 1e-4, 1.0)
    rce = -jnp.sum(p * jnp.log(oh), axis=1)
    return alpha * ce + beta * jnp.mean(rce)


if __name__ == "__main__":
    key = jax.random.PRNGKey(0)
    k = jax.random.split(key, 6)

    # Case 1: module default num_classes=2, single tile, batch-on-lanes layout.
    N1, C1 = 8, 2
    x1 = jax.random.normal(k[0], (N1, C1), dtype=jnp.float32)
    t1 = jax.random.randint(k[1], (N1,), 0, C1, dtype=jnp.int32)
    l1 = symmetric_cross_entropy(x1, t1)
    jax.block_until_ready(l1)
    r1 = _reference(x1, t1)
    assert jnp.allclose(l1, r1, rtol=1e-5, atol=1e-5), (l1, r1)

    # Case 2: small class count, multi-tile grid with a masked partial last tile.
    N2, C2 = 300, 8
    x2 = jax.random.normal(k[2], (N2, C2), dtype=jnp.float32)
    t2 = jax.random.randint(k[3], (N2,), 0, C2, dtype=jnp.int32)
    l2 = symmetric_cross_entropy(x2, t2, tile_n=128)
    jax.block_until_ready(l2)
    r2 = _reference(x2, t2)
    assert jnp.allclose(l2, r2, rtol=1e-5, atol=1e-5), (l2, r2)

    # Case 3: wide class axis -> classes-on-lanes layout, masked partial last tile.
    N3, C3 = 20, 256
    x3 = jax.random.normal(k[4], (N3, C3), dtype=jnp.float32)
    t3 = jax.random.randint(k[5], (N3,), 0, C3, dtype=jnp.int32)
    l3 = symmetric_cross_entropy(x3, t3, tile_n=8)
    jax.block_until_ready(l3)
    r3 = _reference(x3, t3)
    assert jnp.allclose(l3, r3, rtol=1e-5, atol=1e-5), (l3, r3)

    print("KERNEL_OK")
</pallas_src>

<mosaic_0001>
module attributes {stable_mosaic.version = 11 : i64} {
  func.func @_sce_kernel(%arg0: i32, %arg1: memref<2x8xf32, #tpu.memory_space<vmem>>, %arg2: memref<1x8xi32, #tpu.memory_space<vmem>>, %arg3: memref<1x1xf32, #tpu.memory_space<smem>>, %arg4: memref<1xf32, #tpu.memory_space<smem>>) attributes {dimension_semantics = [#tpu.dimension_semantics<arbitrary>], iteration_bounds = array<i64: 1>, scalar_prefetch = 0 : i64, scratch_operands = 1 : i64, tpu.core_type = #tpu.core_type<tc>, window_params = [{transform_indices = @transform_0, window_bounds = array<i64: 2, 8>}, {transform_indices = @transform_1, window_bounds = array<i64: 1, 8>}, {transform_indices = @transform_2, window_bounds = array<i64: 1, 1>}]} {
    %c0_i32 = arith.constant 0 : i32
    %0 = arith.cmpi eq, %arg0, %c0_i32 : i32
    %1 = arith.extui %0 : i1 to i32
    %c0_i32_0 = arith.constant 0 : i32
    %2 = arith.cmpi ne, %1, %c0_i32_0 : i32
    scf.if %2 {
      %cst_21 = arith.constant 0.000000e+00 : f32
      %c0_22 = arith.constant 0 : index
      %68 = memref.load %arg4[%c0_22] : memref<1xf32, #tpu.memory_space<smem>>
      memref.store %cst_21, %arg4[%c0_22] : memref<1xf32, #tpu.memory_space<smem>>
    } else {
    }
    %c0 = arith.constant 0 : index
    %c0_1 = arith.constant 0 : index
    %3 = vector.load %arg1[%c0, %c0_1] : memref<2x8xf32, #tpu.memory_space<vmem>>, vector<2x8xf32>
    %c0_2 = arith.constant 0 : index
    %c0_3 = arith.constant 0 : index
    %4 = vector.load %arg2[%c0_2, %c0_3] : memref<1x8xi32, #tpu.memory_space<vmem>>, vector<1x8xi32>
    %c8_i32 = arith.constant 8 : i32
    %5 = arith.muli %arg0, %c8_i32 : i32
    %6 = tpu.iota {dimensions = array<i32: 1>} : vector<1x8xi32>
    %7 = vector.broadcast %5 : i32 to vector<1x8xi32>
    %8 = arith.addi %7, %6 : vector<1x8xi32>
    %c8_i32_4 = arith.constant 8 : i32
    %9 = vector.broadcast %c8_i32_4 : i32 to vector<1x8xi32>
    %10 = arith.cmpi slt, %8, %9 : vector<1x8xi32>
    %11 = arith.extui %10 : vector<1x8xi1> to vector<1x8xi32>
    %12 = arith.sitofp %11 : vector<1x8xi32> to vector<1x8xf32>
    %cst = arith.constant 0.000000e+00 : f32
    %13 = vector.shape_cast %10 : vector<1x8xi1> to vector<1x8xi1>
    %14 = vector.broadcast %13 : vector<1x8xi1> to vector<2x8xi1>
    %15 = vector.broadcast %cst : f32 to vector<2x8xf32>
    %16 = arith.select %14, %3, %15 : vector<2x8xi1>, vector<2x8xf32>
    %17 = tpu.iota {dimensions = array<i32: 0>} : vector<2x8xi32>
    %18 = vector.broadcast %4 : vector<1x8xi32> to vector<2x8xi32>
    %19 = arith.cmpi eq, %17, %18 : vector<2x8xi32>
    %cst_5 = arith.constant dense<0xFF800000> : vector<8xf32>
    %20 = vector.multi_reduction <maximumf>, %16, %cst_5 [0] : vector<2x8xf32> to vector<8xf32>
    %21 = vector.shape_cast %20 : vector<8xf32> to vector<1x8xf32>
    %22 = vector.broadcast %21 : vector<1x8xf32> to vector<2x8xf32>
    %23 = arith.subf %16, %22 : vector<2x8xf32>
    %24 = math.exp %23 : vector<2x8xf32>
    %cst_6 = arith.constant dense<0.000000e+00> : vector<8xf32>
    %25 = vector.multi_reduction <add>, %24, %cst_6 [0] : vector<2x8xf32> to vector<8xf32>
    %26 = vector.shape_cast %25 : vector<8xf32> to vector<1x8xf32>
    %27 = tpu.reciprocal %26 : vector<1x8xf32> -> vector<1x8xf32>
    %cst_7 = arith.constant 0.000000e+00 : f32
    %28 = vector.broadcast %cst_7 : f32 to vector<2x8xf32>
    %29 = arith.select %19, %16, %28 : vector<2x8xi1>, vector<2x8xf32>
    %cst_8 = arith.constant dense<0.000000e+00> : vector<8xf32>
    %30 = vector.multi_reduction <add>, %29, %cst_8 [0] : vector<2x8xf32> to vector<8xf32>
    %31 = vector.shape_cast %30 : vector<8xf32> to vector<1x8xf32>
    %32 = math.log %26 : vector<1x8xf32>
    %33 = arith.addf %21, %32 : vector<1x8xf32>
    %34 = arith.subf %33, %31 : vector<1x8xf32>
    %cst_9 = arith.constant 1.000000e-07 : f32
    %35 = vector.broadcast %cst_9 : f32 to vector<1x8xf32>
    %36 = arith.mulf %35, %26 : vector<1x8xf32>
    %37 = vector.broadcast %36 : vector<1x8xf32> to vector<2x8xf32>
    %38 = arith.maximumf %24, %37 : vector<2x8xf32>
    %cst_10 = arith.constant dense<0.000000e+00> : vector<8xf32>
    %39 = vector.multi_reduction <add>, %38, %cst_10 [0] : vector<2x8xf32> to vector<8xf32>
    %40 = vector.shape_cast %39 : vector<8xf32> to vector<1x8xf32>
    %41 = arith.mulf %27, %40 : vector<1x8xf32>
    %42 = arith.subf %31, %21 : vector<1x8xf32>
    %43 = math.exp %42 : vector<1x8xf32>
    %44 = arith.mulf %43, %27 : vector<1x8xf32>
    %cst_11 = arith.constant 1.000000e-07 : f32
    %cst_12 = arith.constant 1.000000e+00 : f32
    %45 = vector.broadcast %cst_11 : f32 to vector<1x8xf32>
    %46 = arith.maximumf %45, %44 : vector<1x8xf32>
    %47 = vector.broadcast %cst_12 : f32 to vector<1x8xf32>
    %48 = arith.minimumf %47, %46 : vector<1x8xf32>
    %49 = arith.subf %41, %48 : vector<1x8xf32>
    %cst_13 = arith.constant 9.21034049 : f32
    %50 = vector.broadcast %cst_13 : f32 to vector<1x8xf32>
    %51 = arith.mulf %50, %49 : vector<1x8xf32>
    %cst_14 = arith.constant 1.000000e-01 : f32
    %52 = vector.broadcast %cst_14 : f32 to vector<1x8xf32>
    %53 = arith.mulf %52, %34 : vector<1x8xf32>
    %cst_15 = arith.constant 1.000000e+00 : f32
    %54 = vector.broadcast %cst_15 : f32 to vector<1x8xf32>
    %55 = arith.mulf %54, %51 : vector<1x8xf32>
    %56 = arith.addf %53, %55 : vector<1x8xf32>
    %57 = arith.mulf %12, %56 : vector<1x8xf32>
    %58 = vector.shape_cast %57 : vector<1x8xf32> to vector<1x1x8xf32>
    %cst_16 = arith.constant dense<0.000000e+00> : vector<1xf32>
    %59 = vector.multi_reduction <add>, %58, %cst_16 [1, 2] : vector<1x1x8xf32> to vector<1xf32>
    %60 = vector.shape_cast %59 : vector<1xf32> to vector<1x1x1xf32>
    %61 = vector.extract %60[0, 0, 0] : f32 from vector<1x1x1xf32>
    %c0_17 = arith.constant 0 : index
    %62 = memref.load %arg4[%c0_17] : memref<1xf32, #tpu.memory_space<smem>>
    %63 = arith.addf %62, %61 : f32
    %c0_18 = arith.constant 0 : index
    %64 = memref.load %arg4[%c0_18] : memref<1xf32, #tpu.memory_space<smem>>
    memref.store %63, %arg4[%c0_18] : memref<1xf32, #tpu.memory_space<smem>>
    %c0_i32_19 = arith.constant 0 : i32
    %65 = arith.cmpi eq, %arg0, %c0_i32_19 : i32
    %66 = arith.extui %65 : i1 to i32
    %c0_i32_20 = arith.constant 0 : i32
    %67 = arith.cmpi ne, %66, %c0_i32_20 : i32
    scf.if %67 {
      %c0_21 = arith.constant 0 : index
      %68 = memref.load %arg4[%c0_21] : memref<1xf32, #tpu.memory_space<smem>>
      %cst_22 = arith.constant 1.250000e-01 : f32
      %69 = arith.mulf %68, %cst_22 : f32
      %c0_23 = arith.constant 0 : index
      %c0_24 = arith.constant 0 : index
      %70 = memref.load %arg3[%c0_23, %c0_24] : memref<1x1xf32, #tpu.memory_space<smem>>
      memref.store %69, %arg3[%c0_23, %c0_24] : memref<1x1xf32, #tpu.memory_space<smem>>
    } else {
    }
    return
  }
  func.func @transform_0(%arg0: i32) -> (i32, i32) {
    %c0_i32 = arith.constant 0 : i32
    %c0_i32_0 = arith.constant 0 : i32
    return %c0_i32, %arg0 : i32, i32
  }
  func.func @transform_1(%arg0: i32) -> (i32, i32) {
    %c0_i32 = arith.constant 0 : i32
    %c0_i32_0 = arith.constant 0 : i32
    return %c0_i32, %arg0 : i32, i32
  }
  func.func @transform_2(%arg0: i32) -> (i32, i32) {
    %c0_i32 = arith.constant 0 : i32
    %c0_i32_0 = arith.constant 0 : i32
    %c0_i32_1 = arith.constant 0 : i32
    return %c0_i32, %c0_i32_0 : i32, i32
  }
}

</mosaic_0001>

<llo_original>
// kernel: tpu_custom_call.1
$region0: #{tpu_custom_call.1}
  #allocation0 [shape = 'u32[]', space=smem, size = 0x4, offset = 0x4, fixed_abs, tag = 'smem constant byte address 0x4 - core index']
  #allocation1 [shape = 'u32[72,128]{1,0:T(1,128)}', space=vmem, size = 0x9000, scoped, tag = 'internal scratch']
  #allocation2 [shape = 'f32[1]{0:T(128)}', space=smem, size = 0x200, scoped, tag = 'scratch operand']
  %s0 = inlined_call_operand.hbm [shape: f32[2,8], index: 0, kind: input, shape index: {}]
  %s1 = inlined_call_operand.hbm [shape: s32[1,8], index: 1, kind: input, shape index: {}]
  %s2 = inlined_call_operand.hbm [shape: f32[1,1], index: 2, kind: output, shape index: {}]
  %s3 = sld [smem:[#allocation0]]
  $region34: #{tpu_custom_call.1} parent=0
    _
  %s5 = ssub.s32 1, %s3
  %s6 = scalar_select 0, %s5, %s3
  $region1: #{tpu_custom_call.1} parent=0
    #allocation3 [shape = 'u8[1024]{0}', space=vmem, size = 0x400, scoped, tag = 'input window, operand 0, single buffered']
    #allocation4 [shape = 's32[1]{0}', space=sflag, size = 0x4, scoped, tag = 'scoped memory for tpu_custom_call.1']
    #allocation5 [shape = 's32[1]{0}', space=sflag, size = 0x4, scoped, tag = 'scoped memory for tpu_custom_call.1']
    #allocation6 [shape = 'u8[512]{0}', space=vmem, size = 0x400, scoped, tag = 'input window, operand 1, single buffered']
    #allocation7 [shape = 's32[1]{0}', space=sflag, size = 0x4, scoped, tag = 'scoped memory for tpu_custom_call.1']
    #allocation8 [shape = 'u8[512]{0}', space=smem, size = 0x200, scoped, tag = 'output window, operand 0, single buffered']
    %7 = vsyncpa [#allocation4], 0
    %8 = vsyncpa [#allocation7], 0
    %9 = vsyncpa [#allocation5], 0
    // Predicated region
    $region2: #{tpu_custom_call.1} parent=1 // pred_check
      _
    $region3: #{tpu_custom_call.1} parent=1 // pred_check_branch
      %11 = sbr.rel (0) target = $region5
    $region4: #{tpu_custom_call.1} parent=1 // pred_region
      %13 = vsyncadd [#allocation4], 0
      %s15 = sshll.u32 %s0, 4
      %s16 = int_to_ptr.hbm [resolvable:$true] %s15
      %s17 = sshll.u32 [#allocation3], 4
      %s18 = int_to_ptr.vmem [resolvable:$true] %s17
      %20 = dma.hbm_to_vmem [thread:$0]  %s16, 32, %s18, [#allocation4]
    $region5: #{tpu_custom_call.1} parent=1 // pred_fallthru
      _
    // Predicated region
    $region6: #{tpu_custom_call.1} parent=1 // pred_check
      _
    $region7: #{tpu_custom_call.1} parent=1 // pred_check_branch
      %22 = sbr.rel (0) target = $region9
    $region8: #{tpu_custom_call.1} parent=1 // pred_region
      %24 = vsyncadd [#allocation7], 0
      %s26 = sshll.u32 %s1, 4
      %s27 = int_to_ptr.hbm [resolvable:$true] %s26
      %s28 = sshll.u32 [#allocation6], 4
      %s29 = int_to_ptr.vmem [resolvable:$true] %s28
      %31 = dma.hbm_to_vmem [thread:$0]  %s27, 16, %s29, [#allocation7]
    $region9: #{tpu_custom_call.1} parent=1 // pred_fallthru
      _
    // Predicated region
    $region10: #{tpu_custom_call.1} parent=1 // pred_check
      _
    $region11: #{tpu_custom_call.1} parent=1 // pred_check_branch
      %33 = sbr.rel (0) target = $region13
    $region12: #{tpu_custom_call.1} parent=1 // pred_region
      %35 = dma.done [#allocation4], 32
    $region13: #{tpu_custom_call.1} parent=1 // pred_fallthru
      _
    // Predicated region
    $region14: #{tpu_custom_call.1} parent=1 // pred_check
      _
    $region15: #{tpu_custom_call.1} parent=1 // pred_check_branch
      %37 = sbr.rel (0) target = $region17
    $region16: #{tpu_custom_call.1} parent=1 // pred_region
      %39 = dma.done [#allocation7], 16
    $region17: #{tpu_custom_call.1} parent=1 // pred_fallthru
      _
    %p40 = scmp.eq.s32.totalorder 0, 0
    // Predicated region
    $region18: #{tpu_custom_call.1} parent=1 // pred_check
      %p41 = pneg %p40
    $region19: #{tpu_custom_call.1} parent=1 // pred_check_branch
      %43 = sbr.rel (%p41) target = $region21
    $region20: #{tpu_custom_call.1} parent=1 // pred_region
      %s44 = scalar_lea.smem [#allocation2], 0
      %45 = sst [smem:[%s44]] 0.0
    $region21: #{tpu_custom_call.1} parent=1 // pred_fallthru
      _
    %v46 = vld [vmem:[#allocation3] sm:$0x3]
    %v47 = vld [vmem:[#allocation6] sm:$0x1]
    %s48 = smul.u32 0, 8
    %v49 = vlaneseq
    %v50 = vand.u32 %v49, 127
    %v51 = vstv %s48
    %v52 = vadd.s32 %v51, %v50
    %vm53 = vcmp.lt.s32.totalorder %v52, 8
    %v54 = vsel %vm53, 1, 0
    %v55 = vcvt.s32.f32 %v54
    %vm56 = vcmp.eq.s32.totalorder %v54, 1
    %v57 = vsel %vm56, %v46, 0.0
    %v58 = vlaneseq
    %v59 = vshrl.u32 %v58, 7
    %v60 = vperm.slane %v47, 0
    %vm61 = vcmp.eq.s32.totalorder %v59, %v60
    %vm62 = vcmask 58368
    %v63 = vsel %vm62, %v57, -inf
    %v64 = vrot.slane %v63, 4
    %v65 = vmax.f32 %v63, %v64
    %v66 = vrot.slane %v65, 2
    %v67 = vmax.f32 %v65, %v66
    %v68 = vrot.slane %v67, 1
    %v69 = vmax.f32 %v67, %v68
    %v70 = vsub.f32 %v57, %v69
    %v71 = vmul.f32 %v70, 1.442695
    %v72 = vpow.pop %v71
    %v73 = vsel %vm62, %v72, 0.0
    %v74 = vrot.slane %v73, 4
    %v75 = vadd.f32 %v73, %v74
    %v76 = vrot.slane %v75, 2
    %v77 = vadd.f32 %v75, %v76
    %v78 = vrot.slane %v77, 1
    %v79 = vadd.f32 %v77, %v78
    %v80 = vrcp.pop %v79
    %v81 = vmul.f32 %v79, %v80
    %v82 = vsub.f32 1.0, %v81
    %v83 = vmul.f32 %v80, %v82
    %v84 = vadd.f32 %v80, %v83
    %vm85 = vweird.f32 %v79
    %vm86 = vweird.f32 %v80
    %vm87 = vmor %vm85, %vm86
    %v88 = vsel %vm87, %v80, %v84
    %v89 = vand.u32 2147483647, %v79
    %vm90 = vcmp.eq.f32.partialorder %v89, 8.507059e+37
    %v91 = vand.u32 %v79, 2147483648
    %v92 = vor.u32 1.1754944e-38, %v91
    %v93 = vsel %vm90, %v92, %v88
    %v94 = vsel %vm61, %v57, 0.0
    %v95 = vsel %vm62, %v94, 0.0
    %v96 = vrot.slane %v95, 4
    %v97 = vadd.f32 %v95, %v96
    %v98 = vrot.slane %v97, 2
    %v99 = vadd.f32 %v97, %v98
    %v100 = vrot.slane %v99, 1
    %v101 = vadd.f32 %v99, %v100
    %v102 = vlog2.pop %v79
    %v103 = vmul.f32 %v102, 0.6931472
    %v104 = vadd.f32 %v69, %v103
    %v105 = vsub.f32 %v104, %v101
    %v106 = vmul.f32 %v79, 1e-07
    %v107 = vmax.f32 %v72, %v106
    %v108 = vsel %vm62, %v107, 0.0
    %v109 = vrot.slane %v108, 4
    %v110 = vadd.f32 %v108, %v109
    %v111 = vrot.slane %v110, 2
    %v112 = vadd.f32 %v110, %v111
    %v113 = vrot.slane %v112, 1
    %v114 = vadd.f32 %v112, %v113
    %v115 = vmul.f32 %v93, %v114
    %v116 = vsub.f32 %v101, %v69
    %v117 = vmul.f32 %v116, 1.442695
    %v118 = vpow.pop %v117
    %v119 = vmul.f32 %v118, %v93
    %v120 = vmax.f32 %v119, 1e-07
    %v121 = vmin.f32 %v120, 1.0
    %v122 = vsub.f32 %v115, %v121
    %v123 = vmul.f32 %v122, 9.2103405
    %v124 = vmul.f32 %v105, 0.1
    %v125 = vadd.f32 %v124, %v123
    %v126 = vmul.f32 %v55, %v125
    %vm127 = vcmask 57344
    %v128 = vsel %vm127, %v126, 0.0
    %129 = vadd.xlane.f32.xlu0 %v128
    %v130 = vpop.xlane.xlu0 %129
    %v131 = vrot.slane %v130, 4
    %v132 = vadd.f32 %v130, %v131
    %v133 = vrot.slane %v132, 2
    %v134 = vadd.f32 %v132, %v133
    %v135 = vrot.slane %v134, 1
    %v136 = vadd.f32 %v134, %v135
    %s137 = vtos %v136
    %s138 = sld [smem:[#allocation2]]
    %s139 = sadd.f32 %s138, %s137
    %s140 = scalar_lea.smem [#allocation2], 0
    %141 = sst [smem:[%s140]] %s139
    // Predicated region
    $region22: #{tpu_custom_call.1} parent=1 // pred_check
      %p142 = pneg %p40
    $region23: #{tpu_custom_call.1} parent=1 // pred_check_branch
      %144 = sbr.rel (%p142) target = $region25
    $region24: #{tpu_custom_call.1} parent=1 // pred_region
      %s145 = sld [smem:[#allocation2]]
      %s146 = smul.f32 %s145, 0.125
      %s147 = scalar_lea.smem [#allocation8], 0
      %148 = sst [smem:[%s147]] %s146
    $region25: #{tpu_custom_call.1} parent=1 // pred_fallthru
      _
    // Predicated region
    $region26: #{tpu_custom_call.1} parent=1 // pred_check
      _
    $region27: #{tpu_custom_call.1} parent=1 // pred_check_branch
      %150 = sbr.rel (0) target = $region29
    $region28: #{tpu_custom_call.1} parent=1 // pred_region
      %152 = vsyncadd [#allocation5], 0
      %s154 = sshll.u32 %s2, 4
      %s155 = int_to_ptr.hbm [resolvable:$true] %s154
      %157 = dma.smem_to_hbm [#allocation8], 16, %s155, [#allocation5]
    $region29: #{tpu_custom_call.1} parent=1 // pred_fallthru
      _
    // Predicated region
    $region30: #{tpu_custom_call.1} parent=1 // pred_check
      _
    $region31: #{tpu_custom_call.1} parent=1 // pred_check_branch
      %159 = sbr.rel (0) target = $region33
    $region32: #{tpu_custom_call.1} parent=1 // pred_region
      %161 = dma.done [#allocation5], 16
    $region33: #{tpu_custom_call.1} parent=1 // pred_fallthru
      _
    %162 = sfence
    %163 = vsyncpa [#allocation4], 1
    %164 = vsyncpa [#allocation7], 1
    %165 = vsyncpa [#allocation5], 1

</llo_original>
